<compile_context>
chip_gen: v6e
topology: v6e:2x2x1
jax: 0.10.0
libtpu: 0.0.40
codegen_flags: <defaults>
</compile_context>

<pallas_src>
import math
import functools

import jax
import jax.numpy as jnp
from jax.experimental import pallas as pl
from jax.experimental.pallas import tpu as pltpu


def make_positional_encoding_table(max_len, n_units, dtype=jnp.float32):
    """Deterministic construction of the sinusoidal PE buffer (plain JAX glue)."""
    assert n_units % 2 == 0, "n_units must be even (same assumption as the PyTorch module)"
    position = jnp.arange(max_len, dtype=jnp.float32)[:, None]                    # (max_len, 1)
    div_term = jnp.exp(
        jnp.arange(0, n_units, 2, dtype=jnp.float32) * (-(math.log(10000.0) / n_units))
    )                                                                             # (D/2,)
    ang = position * div_term                                                     # (max_len, D/2)
    pe = jnp.zeros((max_len, n_units), dtype=jnp.float32)
    pe = pe.at[:, 0::2].set(jnp.sin(ang))
    pe = pe.at[:, 1::2].set(jnp.cos(ang))
    return pe.astype(dtype)


# ------------------------------ kernels ------------------------------------


def _pe_add_kernel(x_ref, pe_ref, o_ref):
    # x_ref: (B, TS, Dp) VMEM tile; pe_ref: (TS, Dp) tile broadcast over batch.
    o_ref[...] = (x_ref[...] + pe_ref[...][None, :, :]).astype(o_ref.dtype)


def _pe_add_dropout_kernel(x_ref, pe_ref, bits_ref, o_ref, *, threshold, scale):
    # Inverted dropout: keep iff bits >= threshold  (P(keep) = 1 - p, exact to 2^-32).
    y = x_ref[...] + pe_ref[...][None, :, :]
    keep = bits_ref[...] >= jnp.uint32(threshold)
    y = jnp.where(keep, y * scale, jnp.zeros_like(y))
    o_ref[...] = y.astype(o_ref.dtype)


# ------------------------------ wrapper ------------------------------------


def _fold_factor(seq_len, n_units):
    """Smallest k with (k*n_units) % 128 == 0 and seq_len % k == 0, else 1."""
    if n_units % 128 == 0:
        return 1
    k = 128 // math.gcd(n_units, 128)
    return k if seq_len % k == 0 else 1


def _choose_seq_tile(sp, b, dp, itemsize, target_bytes=2 * 1024 * 1024):
    """Largest divisor of sp (multiple of the sublane pack, or == sp) with
    B*tile*Dp*itemsize <= target. Falls back to the smallest valid tile."""
    sub = 16 if itemsize == 2 else 8
    cands = [t for t in range(1, sp + 1) if sp % t == 0 and (t % sub == 0 or t == sp)]
    fitting = [t for t in cands if b * t * dp * itemsize <= target_bytes]
    return max(fitting) if fitting else min(cands)


def positional_encoding_forward(x, pe_table, *, p=0.0, training=False, rng_key=None):
    """x: (B, S, D); pe_table: (max_len, D) with max_len >= S."""
    B, S, D = x.shape
    assert pe_table.shape[0] >= S and pe_table.shape[1] == D

    # Cast PE slice to the activation dtype outside the kernel.
    pe = pe_table[:S].astype(x.dtype)

    # Lane-dense fold: (B, S, D) -> (B, S/k, k*D) so the last dim is a multiple of 128.
    k = _fold_factor(S, D)
    Sp, Dp = S // k, D * k
    xf = x.reshape(B, Sp, Dp)
    pef = pe.reshape(Sp, Dp)

    itemsize = jnp.dtype(x.dtype).itemsize
    tile_s = _choose_seq_tile(Sp, B, Dp, itemsize)
    grid = (Sp // tile_s,)

    x_spec = pl.BlockSpec((B, tile_s, Dp), lambda i: (0, i, 0))
    pe_spec = pl.BlockSpec((tile_s, Dp), lambda i: (i, 0))
    out_spec = pl.BlockSpec((B, tile_s, Dp), lambda i: (0, i, 0))

    x_bytes = B * S * D * itemsize
    pe_bytes = S * D * itemsize

    use_dropout = bool(training) and float(p) > 0.0
    if use_dropout:
        if rng_key is None:
            rng_key = jax.random.PRNGKey(0)
        # Random bits generated in plain JAX (portable); keep decision done in-kernel.
        bits = jax.random.bits(rng_key, (B, Sp, Dp), dtype=jnp.uint32)
        threshold = min(max(int(round(float(p) * 2.0 ** 32)), 0), 2 ** 32 - 1)
        scale = 1.0 / (1.0 - float(p))
        kernel = functools.partial(_pe_add_dropout_kernel, threshold=threshold, scale=scale)
        in_specs = [x_spec, pe_spec, pl.BlockSpec((B, tile_s, Dp), lambda i: (0, i, 0))]
        args = (xf, pef, bits)
        bytes_accessed = 2 * x_bytes + pe_bytes + B * S * D * 4
        flops = 3 * B * S * D
    else:
        kernel = _pe_add_kernel
        in_specs = [x_spec, pe_spec]
        args = (xf, pef)
        bytes_accessed = 2 * x_bytes + pe_bytes
        flops = B * S * D

    out = pl.pallas_call(
        kernel,
        out_shape=jax.ShapeDtypeStruct((B, Sp, Dp), x.dtype),
        grid=grid,
        in_specs=in_specs,
        out_specs=out_spec,
        compiler_params=pltpu.CompilerParams(
            dimension_semantics=("parallel",),       # independent tiles -> megacore on v7x
            vmem_limit_bytes=32 * 1024 * 1024,       # headroom for double-buffered blocks
        ),
        cost_estimate=pl.CostEstimate(
            flops=flops, transcendentals=0, bytes_accessed=bytes_accessed),
    )(*args)

    return out.reshape(B, S, D)


# ------------------------------ demo / check --------------------------------

if __name__ == "__main__":
    # Small shapes consistent with the module's forward: (batch, seq, n_units)
    B, S, D = 2, 8, 32
    MAX_LEN = 64
    DROPOUT_P = 0.1

    key = jax.random.PRNGKey(0)
    kx, kd = jax.random.split(key)
    x = jax.random.normal(kx, (B, S, D), dtype=jnp.float32)
    pe_table = make_positional_encoding_table(MAX_LEN, D, dtype=jnp.float32)

    # Eval-mode forward (dropout is identity) — deterministic, checked vs. reference.
    out_eval = jax.block_until_ready(
        positional_encoding_forward(x, pe_table, p=DROPOUT_P, training=False))
    ref = x + pe_table[:S][None, :, :]
    assert out_eval.shape == (B, S, D)
    assert jnp.allclose(out_eval, ref, atol=1e-6, rtol=1e-6), "mismatch vs reference"

    # Train-mode forward (stochastic inverted dropout).
    out_train = jax.block_until_ready(
        positional_encoding_forward(x, pe_table, p=DROPOUT_P, training=True, rng_key=kd))
    assert out_train.shape == (B, S, D)
    scale = 1.0 / (1.0 - DROPOUT_P)
    # Every element must be either dropped (0) or kept and scaled by 1/(1-p).
    ok = jnp.isclose(out_train, ref * scale, atol=1e-5) | jnp.isclose(out_train, 0.0, atol=1e-6)
    assert bool(jnp.all(ok)), "dropout output is not {0, (x+pe)/(1-p)} elementwise"

    print("KERNEL_OK")
</pallas_src>

<mosaic_0001>
module attributes {stable_mosaic.version = 11 : i64} {
  func.func @_pe_add_kernel(%arg0: i32, %arg1: memref<2x2x128xf32, #tpu.memory_space<vmem>>, %arg2: memref<2x128xf32, #tpu.memory_space<vmem>>, %arg3: memref<2x2x128xf32, #tpu.memory_space<vmem>>) attributes {dimension_semantics = [#tpu.dimension_semantics<parallel>], iteration_bounds = array<i64: 1>, scalar_prefetch = 0 : i64, scratch_operands = 0 : i64, tpu.core_type = #tpu.core_type<tc>, window_params = [{transform_indices = @transform_0, window_bounds = array<i64: 2, 2, 128>}, {transform_indices = @transform_1, window_bounds = array<i64: 2, 128>}, {transform_indices = @transform_2, window_bounds = array<i64: 2, 2, 128>}]} {
    %c0 = arith.constant 0 : index
    %c0_0 = arith.constant 0 : index
    %c0_1 = arith.constant 0 : index
    %0 = vector.load %arg1[%c0, %c0_0, %c0_1] : memref<2x2x128xf32, #tpu.memory_space<vmem>>, vector<2x2x128xf32>
    %c0_2 = arith.constant 0 : index
    %c0_3 = arith.constant 0 : index
    %1 = vector.load %arg2[%c0_2, %c0_3] : memref<2x128xf32, #tpu.memory_space<vmem>>, vector<2x128xf32>
    %2 = vector.shape_cast %1 : vector<2x128xf32> to vector<1x2x128xf32>
    %3 = vector.broadcast %2 : vector<1x2x128xf32> to vector<2x2x128xf32>
    %4 = arith.addf %0, %3 : vector<2x2x128xf32>
    %c0_4 = arith.constant 0 : index
    %c0_5 = arith.constant 0 : index
    %c0_6 = arith.constant 0 : index
    %5 = vector.load %arg3[%c0_4, %c0_5, %c0_6] : memref<2x2x128xf32, #tpu.memory_space<vmem>>, vector<2x2x128xf32>
    tpu.vector_store %arg3[%c0_4, %c0_5, %c0_6], %4 {strides = array<i32>} : memref<2x2x128xf32, #tpu.memory_space<vmem>>, vector<2x2x128xf32>,
    return
  }
  func.func @transform_0(%arg0: i32) -> (i32, i32, i32) {
    %c0_i32 = arith.constant 0 : i32
    %c0_i32_0 = arith.constant 0 : i32
    %c0_i32_1 = arith.constant 0 : i32
    return %c0_i32, %arg0, %c0_i32_0 : i32, i32, i32
  }
  func.func @transform_1(%arg0: i32) -> (i32, i32) {
    %c0_i32 = arith.constant 0 : i32
    %c0_i32_0 = arith.constant 0 : i32
    return %arg0, %c0_i32 : i32, i32
  }
  func.func @transform_2(%arg0: i32) -> (i32, i32, i32) {
    %c0_i32 = arith.constant 0 : i32
    %c0_i32_0 = arith.constant 0 : i32
    %c0_i32_1 = arith.constant 0 : i32
    return %c0_i32, %arg0, %c0_i32_0 : i32, i32, i32
  }
}

</mosaic_0001>

<llo_original>
// kernel: tpu_custom_call.1
$region0: #{tpu_custom_call.1}
  #allocation0 [shape = 'u32[]', space=smem, size = 0x4, offset = 0x4, fixed_abs, tag = 'smem constant byte address 0x4 - core index']
  #allocation1 [shape = 'u32[144,128]{1,0:T(1,128)}', space=vmem, size = 0x12000, scoped, tag = 'internal scratch']
  %s0 = inlined_call_operand.hbm [shape: f32[2,2,128], index: 0, kind: input, shape index: {}]
  %s1 = inlined_call_operand.hbm [shape: f32[2,128], index: 1, kind: input, shape index: {}]
  %s2 = inlined_call_operand.hbm [shape: f32[2,2,128], index: 2, kind: output, shape index: {}]
  %s3 = sld [smem:[#allocation0]]
  $region26: #{tpu_custom_call.1} parent=0
    _
  %s5 = ssub.s32 1, %s3
  %s6 = scalar_select 0, %s5, %s3
  $region1: #{tpu_custom_call.1} parent=0
    #allocation2 [shape = 'u8[2048]{0}', space=vmem, size = 0x800, scoped, tag = 'input window, operand 0, single buffered']
    #allocation3 [shape = 's32[1]{0}', space=sflag, size = 0x4, scoped, tag = 'scoped memory for tpu_custom_call.1']
    #allocation4 [shape = 's32[1]{0}', space=sflag, size = 0x4, scoped, tag = 'scoped memory for tpu_custom_call.1']
    #allocation5 [shape = 'u8[1024]{0}', space=vmem, size = 0x400, scoped, tag = 'input window, operand 1, single buffered']
    #allocation6 [shape = 's32[1]{0}', space=sflag, size = 0x4, scoped, tag = 'scoped memory for tpu_custom_call.1']
    #allocation7 [shape = 'u8[2048]{0}', space=vmem, size = 0x800, scoped, tag = 'output window, operand 0, single buffered']
    %7 = vsyncpa [#allocation3], 0
    %8 = vsyncpa [#allocation6], 0
    %9 = vsyncpa [#allocation4], 0
    // Predicated region
    $region2: #{tpu_custom_call.1} parent=1 // pred_check
      _
    $region3: #{tpu_custom_call.1} parent=1 // pred_check_branch
      %11 = sbr.rel (0) target = $region5
    $region4: #{tpu_custom_call.1} parent=1 // pred_region
      %s13 = ssub.s32 64, 64
      %14 = vsyncadd [#allocation3], %s13
      %s15 = sshll.u32 [#allocation2], 4
      %s16 = int_to_ptr.vmem [resolvable:$true] %s15
      %21 = dma.hbm_to_vmem [thread:$0]  %s0, 64, %s16, [#allocation3], 32, 32, 2
    $region5: #{tpu_custom_call.1} parent=1 // pred_fallthru
      _
    // Predicated region
    $region6: #{tpu_custom_call.1} parent=1 // pred_check
      _
    $region7: #{tpu_custom_call.1} parent=1 // pred_check_branch
      %23 = sbr.rel (0) target = $region9
    $region8: #{tpu_custom_call.1} parent=1 // pred_region
      %s25 = ssub.s32 32, 32
      %26 = vsyncadd [#allocation6], %s25
      %s28 = sshll.u32 [#allocation5], 4
      %s29 = int_to_ptr.vmem [resolvable:$true] %s28
      %31 = dma.hbm_to_vmem [thread:$0]  %s1, 32, %s29, [#allocation6]
    $region9: #{tpu_custom_call.1} parent=1 // pred_fallthru
      _
    // Predicated region
    $region10: #{tpu_custom_call.1} parent=1 // pred_check
      _
    $region11: #{tpu_custom_call.1} parent=1 // pred_check_branch
      %33 = sbr.rel (0) target = $region13
    $region12: #{tpu_custom_call.1} parent=1 // pred_region
      %34 = dma.done [#allocation3], 64
    $region13: #{tpu_custom_call.1} parent=1 // pred_fallthru
      _
    // Predicated region
    $region14: #{tpu_custom_call.1} parent=1 // pred_check
      _
    $region15: #{tpu_custom_call.1} parent=1 // pred_check_branch
      %36 = sbr.rel (0) target = $region17
    $region16: #{tpu_custom_call.1} parent=1 // pred_region
      %37 = dma.done [#allocation6], 32
    $region17: #{tpu_custom_call.1} parent=1 // pred_fallthru
      _
    %v38 = vld [vmem:[#allocation2] sm:$0x3]
    %v39 = vld [vmem:[#allocation2 + $0x2] sm:$0x3]
    %v40 = vld [vmem:[#allocation5] sm:$0x3]
    %v41 = vadd.f32 %v38, %v40
    %v42 = vadd.f32 %v39, %v40
    %43 = vst [vmem:[#allocation7] sm:$0x3] %v41
    %44 = vst [vmem:[#allocation7 + $0x2] sm:$0x3] %v42
    // Predicated region
    $region18: #{tpu_custom_call.1} parent=1 // pred_check
      _
    $region19: #{tpu_custom_call.1} parent=1 // pred_check_branch
      %46 = sbr.rel (0) target = $region21
    $region20: #{tpu_custom_call.1} parent=1 // pred_region
      %s48 = ssub.s32 64, 64
      %49 = vsyncadd [#allocation4], %s48
      %s50 = sshll.u32 [#allocation7], 4
      %s51 = int_to_ptr.vmem [resolvable:$true] %s50
      %56 = dma.vmem_to_hbm [thread:$0]  %s51, 64, %s2, [#allocation4], 32, 32, 2
    $region21: #{tpu_custom_call.1} parent=1 // pred_fallthru
      _
    // Predicated region
    $region22: #{tpu_custom_call.1} parent=1 // pred_check
      _
    $region23: #{tpu_custom_call.1} parent=1 // pred_check_branch
      %58 = sbr.rel (0) target = $region25
    $region24: #{tpu_custom_call.1} parent=1 // pred_region
      %59 = dma.done [#allocation4], 64
    $region25: #{tpu_custom_call.1} parent=1 // pred_fallthru
      _
    %60 = vsyncpa [#allocation3], 1
    %61 = vsyncpa [#allocation6], 1
    %62 = vsyncpa [#allocation4], 1

</llo_original>
